<compile_context>
chip_gen: v7x
topology: tpu7x:2x2x1
jax: 0.10.0
libtpu: 0.0.40
codegen_flags: <defaults>
</compile_context>

<pallas_src>
import math
import jax
import jax.numpy as jnp
from jax.experimental import pallas as pl
from jax.experimental.pallas import tpu as pltpu

KH = 10  # fixed kernel height from the module: weight shape [O, C, 10, 1]


def _phd_conv_kernel(x_ref, w_ref, b_ref, o_ref):
    # x_ref: (K, TP) bf16, w_ref: (O, K) bf16, b_ref: (O, 1) f32,
    # o_ref: (O, TP) f32.  MXU matmul with f32 accumulation; bias+ReLU on VPU.
    acc = jnp.dot(w_ref[...], x_ref[...], preferred_element_type=jnp.float32)
    o_ref[...] = jnp.maximum(acc + b_ref[...], 0.0).astype(o_ref.dtype)


def _vmem_budget_bytes():
    # <= 96 MiB on 128-MiB parts (v5e/v6e), <= 48 MiB on 64-MiB parts (v7x):
    # keeps double-buffering alive and leaves compiler scratch headroom.
    try:
        cap = pltpu.get_tpu_info().vmem_capacity_bytes
    except Exception:
        cap = 64 * 1024 * 1024
    return min(cap * 3 // 4, 96 * 1024 * 1024)


def phd_conv2d(inp, conv_table, weight, bias, stride):
    """inp: (B, C, N) f32; conv_table: (10, P) int32;
    weight: (O, C, 10, 1) f32; bias: (O,) f32; stride: int or (sh, sw).
    Returns relu(conv2d(inp[..., conv_table], weight, bias, stride)):
    shape (B, O, 1, P_out), or (O, 1, P_out) when B == 1 (PyTorch squeeze)."""
    B, C, N = inp.shape
    kh, P = conv_table.shape
    assert kh == KH
    O = weight.shape[0]
    K = C * KH

    # Stride the TABLE, not the gathered tensor (only the W stride matters).
    stride_w = int(stride[-1]) if isinstance(stride, (tuple, list)) else int(stride)
    tbl = conv_table[:, ::stride_w]                       # (KH, P_out)
    P_out = tbl.shape[1]

    # Cast BEFORE the gather: the gather reads 2 B/elem and no separate
    # convert pass runs over the 10x-expanded tensor.
    inp_bf = inp.astype(jnp.bfloat16)

    # Fold batch into the lane dim when P_out alone would leave the 128-lane
    # vregs mostly padding.  x is then laid out as (K, B*P_out).
    fold_batch = (P_out < 256) and (B > 1)
    if fold_batch:
        x_src = jnp.transpose(inp_bf, (1, 0, 2)).reshape(1, C, B * N)
        offs = (jnp.arange(B, dtype=tbl.dtype) * N)[None, :, None]
        tbl_g = (tbl[:, None, :] + offs).reshape(KH, B * P_out)
        Bg, Pg = 1, B * P_out
    else:
        x_src, tbl_g = inp_bf, tbl
        Bg, Pg = B, P_out

    # --- lane tiling: balanced tiles sized from the per-chip VMEM budget ----
    vmem_limit = _vmem_budget_bytes()
    resident = O * K * 2 + O * 4                          # weights + bias
    budget = max(vmem_limit - resident - 2 * 1024 * 1024, 1 * 1024 * 1024)
    # per lane column: double-buffered x (bf16) + out (f32) blocks
    tp_cap = budget // (2 * (2 * K) + 2 * (4 * O))
    tp_cap = max(128, min(2048, (tp_cap // 128) * 128))
    num_tiles = pl.cdiv(Pg, tp_cap)
    TP = 128 * pl.cdiv(Pg, 128 * num_tiles)
    if Bg * num_tiles < 2 and Pg > 128:
        # keep both v7x TensorCores busy when the grid would be degenerate
        num_tiles = 2
        TP = 128 * pl.cdiv(Pg, 2 * 128)
    P_pad = num_tiles * TP

    # Pad the *table* (repeat the last valid column), never the gathered x.
    if P_pad != Pg:
        tbl_g = jnp.pad(tbl_g, ((0, 0), (0, P_pad - Pg)), mode="edge")

    # Gather (Bg, C, Ng) -> (Bg, C, KH, P_pad); merging (C, KH) -> K is a
    # contiguous reshape.  This is the single pass over the expanded tensor.
    x = x_src[..., tbl_g].reshape(Bg, K, P_pad)

    w2d = weight[..., 0].reshape(O, K).astype(jnp.bfloat16)   # (O, C*KH)
    b2d = bias.astype(jnp.float32).reshape(O, 1)              # lane-broadcast

    grid = (Bg, num_tiles)
    cost = pl.CostEstimate(
        flops=2 * Bg * P_pad * K * O,
        transcendentals=0,
        bytes_accessed=x.size * 2 + w2d.size * 2 + b2d.size * 4
        + Bg * O * P_pad * 4,
    )

    out = pl.pallas_call(
        _phd_conv_kernel,
        out_shape=jax.ShapeDtypeStruct((Bg, O, P_pad), jnp.float32),
        grid=grid,
        in_specs=[
            # batch dim squeezed out of the kernel view -> (K, TP)
            pl.BlockSpec((None, K, TP), lambda b, p: (b, 0, p)),
            pl.BlockSpec((O, K), lambda b, p: (0, 0)),      # weights resident
            pl.BlockSpec((O, 1), lambda b, p: (0, 0)),      # bias resident
        ],
        out_specs=pl.BlockSpec((None, O, TP), lambda b, p: (b, 0, p)),
        compiler_params=pltpu.CompilerParams(
            dimension_semantics=("parallel", "parallel"),
            vmem_limit_bytes=vmem_limit,
        ),
        cost_estimate=cost,
    )(x, w2d, b2d)

    out = out[:, :, :Pg]                                   # strip lane padding
    if fold_batch:
        out = out[0].reshape(O, B, P_out).transpose(1, 0, 2)
    out = out[:, :, None, :]                               # NCHW: H == 1
    if B == 1:                                             # PyTorch .squeeze()
        out = out[0]
    return out


if __name__ == "__main__":
    key = jax.random.PRNGKey(0)
    B, in_dim, out_dim, N, P, stride = 2, 4, 8, 64, 16, 2
    k1, k2, k3, k4 = jax.random.split(key, 4)

    inp = jax.random.normal(k1, (B, in_dim, N), dtype=jnp.float32)
    conv_table = jax.random.randint(k2, (KH, P), 0, N, dtype=jnp.int32)

    # deterministic parameter init mirroring reset_parameters():
    # kaiming_uniform_(a=sqrt(5)) / uniform bias, fan_in = in_dim*10*1.
    fan_in = in_dim * KH * 1
    bound = 1.0 / math.sqrt(fan_in)
    weight = jax.random.uniform(k3, (out_dim, in_dim, KH, 1), jnp.float32,
                                -bound, bound)
    bias = jax.random.uniform(k4, (out_dim,), jnp.float32, -bound, bound)

    out = phd_conv2d(inp, conv_table, weight, bias, stride)
    out = jax.block_until_ready(out)

    # plain-JAX reference of the same forward (bf16-rounded inputs to match
    # the bf16 x bf16 -> f32 MXU path; accumulation stays f32).
    tbl = conv_table[:, ::stride]
    P_out = tbl.shape[1]
    xg = inp.astype(jnp.bfloat16).astype(jnp.float32)[..., tbl]   # (B,C,10,Po)
    wg = weight[..., 0].astype(jnp.bfloat16).astype(jnp.float32)  # (O,C,10)
    ref = jnp.einsum('bckp,ock->bop', xg, wg,
                     precision=jax.lax.Precision.HIGHEST) + bias[None, :, None]
    ref = jnp.maximum(ref, 0.0)[:, :, None, :]

    assert out.shape == (B, out_dim, 1, P_out), out.shape
    assert jnp.allclose(out, ref, atol=1e-4, rtol=1e-4)

    print("KERNEL_OK")
</pallas_src>

<mosaic_0001>
module attributes {stable_mosaic.version = 11 : i64} {
  func.func @_phd_conv_kernel(%arg0: i32, %arg1: i32, %arg2: memref<1x40x128xbf16, #tpu.memory_space<vmem>>, %arg3: memref<8x40xbf16, #tpu.memory_space<vmem>>, %arg4: memref<8x1xf32, #tpu.memory_space<vmem>>, %arg5: memref<1x8x128xf32, #tpu.memory_space<vmem>>) attributes {dimension_semantics = [#tpu.dimension_semantics<parallel>, #tpu.dimension_semantics<parallel>], iteration_bounds = array<i64: 1, 1>, scalar_prefetch = 0 : i64, scratch_operands = 0 : i64, tpu.core_type = #tpu.core_type<tc>, window_params = [{transform_indices = @transform_0, window_bounds = array<i64: 1, 40, 128>}, {pipeline_mode = #tpu.pipeline_mode<synchronous>, transform_indices = @transform_1, window_bounds = array<i64: 8, 40>}, {pipeline_mode = #tpu.pipeline_mode<synchronous>, transform_indices = @transform_2, window_bounds = array<i64: 8, 1>}, {transform_indices = @transform_3, window_bounds = array<i64: 1, 8, 128>}]} {
    %c0 = arith.constant 0 : index
    %c0_0 = arith.constant 0 : index
    %0 = vector.load %arg3[%c0, %c0_0] : memref<8x40xbf16, #tpu.memory_space<vmem>>, vector<8x40xbf16>
    %c0_1 = arith.constant 0 : index
    %c0_2 = arith.constant 0 : index
    %c0_3 = arith.constant 0 : index
    %1 = vector.load %arg2[%c0_1, %c0_2, %c0_3] : memref<1x40x128xbf16, #tpu.memory_space<vmem>>, vector<1x40x128xbf16>
    %2 = vector.shape_cast %1 : vector<1x40x128xbf16> to vector<40x128xbf16>
    %cst = arith.constant dense<0.000000e+00> : vector<8x128xf32>
    %3 = tpu.matmul %0, %2, %cst {dimension_numbers = #tpu.dot_dimension_numbers<[1], [0], [0], [1], [0, 0, 1, 1], [], []>} : vector<8x40xbf16>, vector<40x128xbf16>, vector<8x128xf32> -> vector<8x128xf32>
    %c0_4 = arith.constant 0 : index
    %c0_5 = arith.constant 0 : index
    %4 = vector.load %arg4[%c0_4, %c0_5] : memref<8x1xf32, #tpu.memory_space<vmem>>, vector<8x1xf32>
    %5 = vector.broadcast %4 : vector<8x1xf32> to vector<8x128xf32>
    %6 = arith.addf %3, %5 : vector<8x128xf32>
    %cst_6 = arith.constant 0.000000e+00 : f32
    %7 = vector.broadcast %cst_6 : f32 to vector<8x128xf32>
    %8 = arith.maximumf %6, %7 : vector<8x128xf32>
    %c0_7 = arith.constant 0 : index
    %c0_8 = arith.constant 0 : index
    %c0_9 = arith.constant 0 : index
    %9 = vector.load %arg5[%c0_7, %c0_8, %c0_9] : memref<1x8x128xf32, #tpu.memory_space<vmem>>, vector<1x8x128xf32>
    %10 = vector.shape_cast %9 : vector<1x8x128xf32> to vector<8x128xf32>
    %11 = vector.shape_cast %8 : vector<8x128xf32> to vector<1x8x128xf32>
    tpu.vector_store %arg5[%c0_7, %c0_8, %c0_9], %11 {strides = array<i32>} : memref<1x8x128xf32, #tpu.memory_space<vmem>>, vector<1x8x128xf32>,
    return
  }
  func.func @transform_0(%arg0: i32, %arg1: i32) -> (i32, i32, i32) {
    %c0_i32 = arith.constant 0 : i32
    %c0_i32_0 = arith.constant 0 : i32
    return %arg0, %c0_i32, %arg1 : i32, i32, i32
  }
  func.func @transform_1(%arg0: i32, %arg1: i32) -> (i32, i32) {
    %c0_i32 = arith.constant 0 : i32
    %c0_i32_0 = arith.constant 0 : i32
    %c0_i32_1 = arith.constant 0 : i32
    return %c0_i32, %c0_i32_0 : i32, i32
  }
  func.func @transform_2(%arg0: i32, %arg1: i32) -> (i32, i32) {
    %c0_i32 = arith.constant 0 : i32
    %c0_i32_0 = arith.constant 0 : i32
    %c0_i32_1 = arith.constant 0 : i32
    return %c0_i32, %c0_i32_0 : i32, i32
  }
  func.func @transform_3(%arg0: i32, %arg1: i32) -> (i32, i32, i32) {
    %c0_i32 = arith.constant 0 : i32
    %c0_i32_0 = arith.constant 0 : i32
    return %arg0, %c0_i32, %arg1 : i32, i32, i32
  }
}

</mosaic_0001>

<llo_original>
// kernel: tpu_custom_call.1
$region0: #{tpu_custom_call.1}
  #allocation0 [shape = 'u32[]', space=smem, size = 0x4, offset = 0x4, fixed_abs, tag = 'smem constant byte address 0x4 - core index']
  #allocation1 [shape = 'u32[144,128]{1,0:T(1,128)}', space=vmem, size = 0x12000, scoped, tag = 'internal scratch']
  %s0 = inlined_call_operand.hbm [shape: bf16[1,40,128], index: 0, kind: input, shape index: {}]
  %s1 = inlined_call_operand.vmem [shape: bf16[8,40], index: 1, kind: input, shape index: {}]
  %s2 = inlined_call_operand.vmem [shape: f32[8,1], index: 2, kind: input, shape index: {}]
  %s3 = inlined_call_operand.hbm [shape: f32[1,8,128], index: 3, kind: output, shape index: {}]
  %s4 = sld [smem:[#allocation0]]
  $region26: #{tpu_custom_call.1} parent=0
    _
  %s6 = ssub.s32 1, %s4
  %s7 = scalar_select 0, %s6, %s4
  $region1: #{tpu_custom_call.1} parent=0
    #allocation2 [shape = 'u8[10240]{0}', space=vmem, size = 0x2800, scoped, tag = 'input window, operand 0, single buffered']
    #allocation3 [shape = 's32[1]{0}', space=sflag, size = 0x4, scoped, tag = 'scoped memory for tpu_custom_call.1']
    #allocation4 [shape = 's32[1]{0}', space=sflag, size = 0x4, scoped, tag = 'scoped memory for tpu_custom_call.1']
    #allocation5 [shape = 'u8[4096]{0}', space=vmem, size = 0x1000, scoped, tag = 'output window, operand 0, single buffered']
    %8 = vsyncpa [#allocation3], 0
    %9 = vsyncpa [#allocation4], 0
    // Predicated region
    $region2: #{tpu_custom_call.1} parent=1 // pred_check
      _
    $region3: #{tpu_custom_call.1} parent=1 // pred_check_branch
      %11 = sbr.rel (0) target = $region5
    $region4: #{tpu_custom_call.1} parent=1 // pred_region
      %s13 = ssub.s32 320, 320
      %14 = vsyncadd [#allocation3], %s13
      %s15 = sshll.u32 [#allocation2], 4
      %s16 = int_to_ptr.vmem [resolvable:$true] %s15
      %21 = dma.hbm_to_vmem [thread:$0]  %s0, 320, %s16, [#allocation3], 64, 64, 4
    $region5: #{tpu_custom_call.1} parent=1 // pred_fallthru
      _
    // Predicated region
    $region6: #{tpu_custom_call.1} parent=1 // pred_check
      _
    $region7: #{tpu_custom_call.1} parent=1 // pred_check_branch
      %23 = sbr.rel (0) target = $region9
    $region8: #{tpu_custom_call.1} parent=1 // pred_region
      _
    $region9: #{tpu_custom_call.1} parent=1 // pred_fallthru
      _
    // Predicated region
    $region10: #{tpu_custom_call.1} parent=1 // pred_check
      _
    $region11: #{tpu_custom_call.1} parent=1 // pred_check_branch
      %25 = sbr.rel (0) target = $region13
    $region12: #{tpu_custom_call.1} parent=1 // pred_region
      _
    $region13: #{tpu_custom_call.1} parent=1 // pred_fallthru
      _
    // Predicated region
    $region14: #{tpu_custom_call.1} parent=1 // pred_check
      _
    $region15: #{tpu_custom_call.1} parent=1 // pred_check_branch
      %27 = sbr.rel (0) target = $region17
    $region16: #{tpu_custom_call.1} parent=1 // pred_region
      %28 = dma.done [#allocation3], 320
    $region17: #{tpu_custom_call.1} parent=1 // pred_fallthru
      _
    %v30 = vld [vmem:[%s1] sm:$0xf]
    %v31 = vld [vmem:[#allocation2] sm:$0xf]
    %v32 = vld [vmem:[#allocation2 + $0x4] sm:$0xf]
    %v33 = vld [vmem:[#allocation2 + $0x8] sm:$0xf]
    %v34 = vld [vmem:[#allocation2 + $0xc] sm:$0xf]
    %v35 = vld [vmem:[#allocation2 + $0x10] sm:$0xf]
    %v36 = vld [vmem:[%s2] sm:$0xff]
    %38 = vset.pattern.permute.xlu0 0
    %39 = vperm.xlu0 %38, %v36
    %v40 = vpop.permute.xlu0 %39
    %v47 = vunpack.c.l.b16 %v31
    %v48 = vunpack.c.l.b16 %v32
    %v49 = vunpack.c.l.b16 %v33
    %v50 = vunpack.c.l.b16 %v34
    %v51 = vunpack.c.l.b16 %v35
    %v52 = vpack.c.b16 %v48, %v47
    %v53 = vpack.c.b16 %v50, %v49
    %v54 = vpack.c.b16 %v51, %v51
    %vm57 = vcmask 326656
    %v59 = vsel %vm57, %v30, 0
    %vm61 = vcmask 1043456
    %v63 = vsel %vm61, %v54, 0
    %65 = vmatprep.subr.bf16.mxu0 0
    %66 = vmatpush1.bf16.msra.mxu0 %v52
    %67 = vmatprep.subr.bf16.mxu0 0
    %68 = vmatpush1.bf16.msra.mxu0 %v53
    %69 = vmatprep.subr.bf16.mxu0 0
    %70 = vmatpush1.bf16.msra.mxu0 %v63
    %71 = vmatprep.subr.bf16.mxu0 0
    %72 = vmatpush1.bf16.msra.mxu0 0
    %73 = vmatprep.subr.bf16.mxu0 0
    %74 = vmatpush1.bf16.msra.mxu0 0
    %75 = vmatprep.subr.bf16.mxu0 0
    %76 = vmatpush1.bf16.msra.mxu0 0
    %77 = vmatprep.subr.bf16.mxu0 0
    %78 = vmatpush1.bf16.msra.mxu0 0
    %79 = vmatprep.subr.bf16.mxu0 0
    %80 = vmatpush1.bf16.msra.mxu0 0
    %81 = vmatprep.subr.bf16.mxu0 0
    %82 = vmatpush1.bf16.msra.mxu0 0
    %83 = vmatprep.subr.bf16.mxu0 0
    %84 = vmatpush1.bf16.msra.mxu0 0
    %85 = vmatprep.subr.bf16.mxu0 0
    %86 = vmatpush1.bf16.msra.mxu0 0
    %87 = vmatprep.subr.bf16.mxu0 0
    %88 = vmatpush1.bf16.msra.mxu0 0
    %89 = vmatprep.subr.bf16.mxu0 0
    %90 = vmatpush1.bf16.msra.mxu0 0
    %91 = vmatprep.subr.bf16.mxu0 0
    %92 = vmatpush1.bf16.msra.mxu0 0
    %93 = vmatprep.subr.bf16.mxu0 0
    %94 = vmatpush1.bf16.msra.mxu0 0
    %95 = vmatprep.subr.bf16.mxu0 0
    %96 = vmatpush1.bf16.msra.mxu0 0
    %97 = vmatprep.mubr.bf16.mxu0 0
    %98 = vmatmul.mubr.bf16.gmra.mrb[0].mxu0 %v59
    %v99 = vpop.f32.mrb[0].mxu0
    %v100 = vadd.f32 %v40, %v99
    %v101 = vpop.f32.mrb[0].mxu0
    %v102 = vpop.f32.mrb[0].mxu0
    %v103 = vpop.f32.mrb[0].mxu0
    %104 = vdwg.mxu0
    %v105 = vmax.f32 %v100, 0.0
    %106 = vst [vmem:[#allocation5] sm:$0xff] %v105
    // Predicated region
    $region18: #{tpu_custom_call.1} parent=1 // pred_check
      _
    $region19: #{tpu_custom_call.1} parent=1 // pred_check_branch
      %108 = sbr.rel (0) target = $region21
    $region20: #{tpu_custom_call.1} parent=1 // pred_region
      %s110 = ssub.s32 128, 128
      %111 = vsyncadd [#allocation4], %s110
      %s113 = sshll.u32 [#allocation5], 4
      %s114 = int_to_ptr.vmem [resolvable:$true] %s113
      %116 = dma.vmem_to_hbm [thread:$0]  %s114, 128, %s3, [#allocation4]
    $region21: #{tpu_custom_call.1} parent=1 // pred_fallthru
      _
    // Predicated region
    $region22: #{tpu_custom_call.1} parent=1 // pred_check
      _
    $region23: #{tpu_custom_call.1} parent=1 // pred_check_branch
      %118 = sbr.rel (0) target = $region25
    $region24: #{tpu_custom_call.1} parent=1 // pred_region
      %119 = dma.done [#allocation4], 128
    $region25: #{tpu_custom_call.1} parent=1 // pred_fallthru
      _
    %120 = vsyncpa [#allocation3], 1
    %121 = vsyncpa [#allocation4], 1

</llo_original>
